<compile_context>
chip_gen: v6e
topology: v6e:2x2x1
jax: 0.10.0
libtpu: 0.0.40
codegen_flags: <defaults>
</compile_context>

<pallas_src>
import functools

import jax
import jax.numpy as jnp
from jax.experimental import pallas as pl
from jax.experimental.pallas import tpu as pltpu


# --------------------------------------------------------------------------
# Kernels
# --------------------------------------------------------------------------
def _maybe_bf16(x, use_bf16):
    if use_bf16 and x.dtype == jnp.float32:
        return x.astype(jnp.bfloat16)
    return x


def _sdpa_kernel_single(q_ref, k_ref, v_ref, out_ref, *attn_refs,
                        inv_temperature, use_bf16_matmul):
    """Single pass over the full key axis.

    Blocks: q (TB,TQ,Dk), k (TB,Lk,Dk), v (TB,Lk,Dv), out (TB,TQ,Dv),
    attn (TB,TQ,Lk) when requested.
    """
    q = _maybe_bf16(q_ref[...], use_bf16_matmul)
    k = _maybe_bf16(k_ref[...], use_bf16_matmul)
    v = _maybe_bf16(v_ref[...], use_bf16_matmul)
    q = q * inv_temperature                      # fold 1/T into q (Lq*Dk scale)

    # Batched QK^T: contract last dims directly (no k relayout in the wrapper;
    # Mosaic feeds the MXU with the transposed operand natively here).
    s = jnp.einsum("bqd,bkd->bqk", q, k, preferred_element_type=jnp.float32)

    # Exact softmax over the last axis (torch dim=2); math in f32.
    s_max = jnp.max(s, axis=-1, keepdims=True)
    p = jnp.exp(s - s_max)
    denom = jnp.sum(p, axis=-1, keepdims=True)
    attn = p / denom                             # exact: stored rows sum to 1

    if attn_refs:
        attn_ref, = attn_refs
        if attn_ref.dtype == v.dtype:
            attn_op = attn.astype(v.dtype)       # single cast: store + matmul
            attn_ref[...] = attn_op
        else:
            attn_ref[...] = attn.astype(attn_ref.dtype)
            attn_op = attn.astype(v.dtype)
    else:
        attn_op = attn.astype(v.dtype)

    out = jnp.einsum("bqk,bkd->bqd", attn_op, v,
                     preferred_element_type=jnp.float32)
    out_ref[...] = out.astype(out_ref.dtype)


def _sdpa_kernel_lk(q_ref, k_ref, v_ref, out_ref, attn_ref,
                    m_sc, l_sc, acc_sc, *,
                    inv_temperature, n_k, use_bf16_matmul):
    """Lk-tiled kernel: two sweeps over the key axis (grid axis 2 = 2*n_k).

    Sweep 0 (ki <  n_k): exact online row max / denominator into scratch.
    Sweep 1 (ki >= n_k): exactly-normalized attn tile stored + f32 out accum.
    q / out / acc stay resident (their block index is constant along ki);
    K streams twice, V and attn move through HBM exactly once.
    """
    ki = pl.program_id(2)

    @pl.when(ki == 0)
    def _init():
        m_sc[...] = jnp.full_like(m_sc, -jnp.inf)
        l_sc[...] = jnp.zeros_like(l_sc)
        acc_sc[...] = jnp.zeros_like(acc_sc)

    q = _maybe_bf16(q_ref[...], use_bf16_matmul)
    k = _maybe_bf16(k_ref[...], use_bf16_matmul)
    q = q * inv_temperature
    s = jnp.einsum("bqd,bkd->bqk", q, k, preferred_element_type=jnp.float32)

    @pl.when(ki < n_k)
    def _stats():
        m_prev = m_sc[...]
        m_new = jnp.maximum(m_prev, jnp.max(s, axis=-1, keepdims=True))
        l_sc[...] = (l_sc[...] * jnp.exp(m_prev - m_new)
                     + jnp.sum(jnp.exp(s - m_new), axis=-1, keepdims=True))
        m_sc[...] = m_new

    @pl.when(ki >= n_k)
    def _emit():
        v = _maybe_bf16(v_ref[...], use_bf16_matmul)
        attn = jnp.exp(s - m_sc[...]) / l_sc[...]   # exact normalization
        if attn_ref.dtype == v.dtype:
            attn_op = attn.astype(v.dtype)
            attn_ref[...] = attn_op
        else:
            attn_ref[...] = attn.astype(attn_ref.dtype)
            attn_op = attn.astype(v.dtype)
        acc_sc[...] += jnp.einsum("bqk,bkd->bqd", attn_op, v,
                                  preferred_element_type=jnp.float32)

    @pl.when(ki == 2 * n_k - 1)
    def _finalize():
        out_ref[...] = acc_sc[...].astype(out_ref.dtype)


# --------------------------------------------------------------------------
# Tile planning (generation-aware VMEM budget + guaranteed shrink path)
# --------------------------------------------------------------------------
def _vmem_capacity_bytes():
    try:
        return int(pltpu.get_tpu_info().vmem_capacity_bytes)
    except Exception:
        return 64 * 1024 * 1024          # conservative: v7x per-core VMEM


def _divisor_tiles(total, preferred=(512, 256, 128)):
    """Candidate tiles dividing `total`: full extent (if small), then 128-mults."""
    cands = []
    if total <= 512:
        cands.append(total)
    for t in preferred:
        if t < total and total % t == 0:
            cands.append(t)
    if not cands:
        cands.append(total)
    return cands


def _plan_tiles(B, Lq, Lk, Dk, Dv, in_dtype, attn_dtype, want_attn):
    """Pick (mode, tb, tq, tk, vmem estimate) under the per-chip VMEM budget."""
    isz = jnp.dtype(in_dtype).itemsize
    asz = jnp.dtype(attn_dtype).itemsize
    usable = int(_vmem_capacity_bytes() * 0.82)   # leave compiler headroom

    def single_bytes(tb, tq):
        blocks = tb * ((tq * Dk + Lk * (Dk + Dv) + tq * Dv) * isz
                       + (tq * Lk * asz if want_attn else 0))
        temps = tb * (2 * tq * Lk * 4 + tq * Lk * isz + tq * Dv * 4)
        return 2 * blocks + temps          # pipelined blocks are double-buffered

    def lk_bytes(tb, tq, tk):
        blocks = tb * ((tq * Dk + tk * (Dk + Dv) + tq * Dv) * isz + tq * tk * asz)
        temps = tb * (2 * tq * tk * 4 + tq * tk * isz
                      + 2 * tq * Dv * 4 + 2 * tq * 4)
        return 2 * blocks + temps

    def fits(nbytes):
        return int(nbytes * 1.25) <= usable   # ~25% headroom for casts/relayouts

    tb_cands = [d for d in range(B, 0, -1) if B % d == 0]

    # 1) Prefer the single-pass kernel (fewest grid steps, exact, K read once).
    best = None
    for tq in _divisor_tiles(Lq):
        for tb in tb_cands:
            est = single_bytes(tb, tq)
            if fits(est):
                score = tb * tq
                if best is None or score > best[0]:
                    best = (score, tb, tq, est)
                break                      # largest fitting tb for this tq
    if best is not None:
        _, tb, tq, est = best
        return dict(mode="single", tb=tb, tq=tq, tk=Lk, est=est)

    # 2) Long key sequences: Lk-tiled two-sweep kernel (tk must be a 128-mult).
    tq = min(_divisor_tiles(Lq))
    for tk in _divisor_tiles(Lk):
        if Lk // tk < 2 or tk % 128 != 0:
            continue
        for tb in tb_cands:
            est = lk_bytes(tb, tq, tk)
            if fits(est):
                return dict(mode="lk", tb=tb, tq=tq, tk=tk, est=est)

    # 3) Best effort: smallest legal configuration, raise vmem_limit.
    lk_tiles = [t for t in _divisor_tiles(Lk) if Lk // t >= 2 and t % 128 == 0]
    if lk_tiles:
        tk = min(lk_tiles)
        return dict(mode="lk", tb=1, tq=tq, tk=tk, est=lk_bytes(1, tq, tk))
    return dict(mode="single", tb=1, tq=tq, tk=Lk, est=single_bytes(1, tq))


# --------------------------------------------------------------------------
# Wrapper
# --------------------------------------------------------------------------
def scaled_dot_product_attention(q, k, v, temperature, *,
                                 return_attn=True, use_bf16_matmul=False):
    """q: [B, Lq, Dk], k: [B, Lk, Dk], v: [B, Lk, Dv].

    Returns (output, attn) like the PyTorch module when return_attn=True,
    otherwise just output (skips the attn HBM writeback when possible).
    """
    B, Lq, Dk = q.shape
    Bk, Lk, Dk2 = k.shape
    Bv, Lkv, Dv = v.shape
    assert Dk == Dk2 and Bk == B and Bv == B and Lkv == Lk

    attn_dtype = q.dtype                     # torch: softmax keeps input dtype
    plan = _plan_tiles(B, Lq, Lk, Dk, Dv, q.dtype, attn_dtype, return_attn)
    tb, tq, tk = plan["tb"], plan["tq"], plan["tk"]
    inv_temperature = 1.0 / float(temperature)

    n_batch = B // tb
    n_q = Lq // tq
    # Megacore: prefer core-sharding the batch axis; if it has >= 2 steps mark
    # the query axis "arbitrary" so K/V blocks are not re-DMA'd on both cores.
    q_sem = "arbitrary" if n_batch >= 2 else "parallel"

    compiler_kwargs = {}
    vmem_needed = int(plan["est"] * 1.25)
    if vmem_needed > 32 * 1024 * 1024:       # only raise above the default
        compiler_kwargs["vmem_limit_bytes"] = min(
            vmem_needed, int(_vmem_capacity_bytes() * 0.82))

    if plan["mode"] == "single":
        out_shape = [jax.ShapeDtypeStruct((B, Lq, Dv), q.dtype)]
        out_specs = [pl.BlockSpec((tb, tq, Dv), lambda bi, qi: (bi, qi, 0))]
        if return_attn:
            out_shape.append(jax.ShapeDtypeStruct((B, Lq, Lk), attn_dtype))
            out_specs.append(
                pl.BlockSpec((tb, tq, Lk), lambda bi, qi: (bi, qi, 0)))
        grid_spec = pltpu.PrefetchScalarGridSpec(
            num_scalar_prefetch=0,
            grid=(n_batch, n_q),
            in_specs=[
                pl.BlockSpec((tb, tq, Dk), lambda bi, qi: (bi, qi, 0)),
                pl.BlockSpec((tb, Lk, Dk), lambda bi, qi: (bi, 0, 0)),
                pl.BlockSpec((tb, Lk, Dv), lambda bi, qi: (bi, 0, 0)),
            ],
            out_specs=out_specs,
        )
        kernel = functools.partial(
            _sdpa_kernel_single,
            inv_temperature=inv_temperature,
            use_bf16_matmul=use_bf16_matmul,
        )
        dims = ("parallel", q_sem)
    else:
        n_k = Lk // tk
        out_shape = [
            jax.ShapeDtypeStruct((B, Lq, Dv), q.dtype),
            jax.ShapeDtypeStruct((B, Lq, Lk), attn_dtype),
        ]
        grid_spec = pltpu.PrefetchScalarGridSpec(
            num_scalar_prefetch=0,
            grid=(n_batch, n_q, 2 * n_k),
            in_specs=[
                pl.BlockSpec((tb, tq, Dk), lambda bi, qi, ki: (bi, qi, 0)),
                pl.BlockSpec((tb, tk, Dk), lambda bi, qi, ki: (bi, ki % n_k, 0)),
                # V is only read in sweep 1: keep block 0 resident in sweep 0.
                pl.BlockSpec((tb, tk, Dv),
                             lambda bi, qi, ki: (bi, (ki // n_k) * (ki % n_k), 0)),
            ],
            out_specs=[
                pl.BlockSpec((tb, tq, Dv), lambda bi, qi, ki: (bi, qi, 0)),
                pl.BlockSpec((tb, tq, tk),
                             lambda bi, qi, ki: (bi, qi, (ki // n_k) * (ki % n_k))),
            ],
            scratch_shapes=[
                pltpu.VMEM((tb, tq, 1), jnp.float32),    # running row max
                pltpu.VMEM((tb, tq, 1), jnp.float32),    # running denominator
                pltpu.VMEM((tb, tq, Dv), jnp.float32),   # f32 output accumulator
            ],
        )
        kernel = functools.partial(
            _sdpa_kernel_lk,
            inv_temperature=inv_temperature,
            n_k=n_k,
            use_bf16_matmul=use_bf16_matmul,
        )
        dims = ("parallel", q_sem, "arbitrary")
        # TODO(synk): when return_attn=False and this path is taken, a single-
        # sweep flash kernel (no attn output) would also halve the K HBM reads.

    results = pl.pallas_call(
        kernel,
        out_shape=tuple(out_shape),
        grid_spec=grid_spec,
        compiler_params=pltpu.CompilerParams(
            dimension_semantics=dims, **compiler_kwargs),
    )(q, k, v)

    output = results[0]
    if not return_attn:
        return output
    return output, results[1]


# --------------------------------------------------------------------------
# Reference + demo
# --------------------------------------------------------------------------
def _reference(q, k, v, temperature):
    attn = jnp.einsum("bqd,bkd->bqk", q, k) / temperature
    attn = jax.nn.softmax(attn, axis=2)
    out = jnp.einsum("bqk,bkd->bqd", attn, v)
    return out, attn


if __name__ == "__main__":
    # Small shapes consistent with the module's forward():
    B, Lq, Lk, Dk, Dv = 2, 8, 8, 32, 32
    temperature = float(Dk) ** 0.5

    key = jax.random.PRNGKey(0)
    kq, kk, kv = jax.random.split(key, 3)
    q = jax.random.normal(kq, (B, Lq, Dk), dtype=jnp.float32)
    k = jax.random.normal(kk, (B, Lk, Dk), dtype=jnp.float32)
    v = jax.random.normal(kv, (B, Lk, Dv), dtype=jnp.float32)

    output, attn = scaled_dot_product_attention(q, k, v, temperature)
    jax.block_until_ready((output, attn))

    ref_out, ref_attn = _reference(q, k, v, temperature)
    assert jnp.allclose(output, ref_out, atol=2e-3, rtol=2e-3), "output mismatch"
    assert jnp.allclose(attn, ref_attn, atol=2e-3, rtol=2e-3), "attn mismatch"

    # Also exercise the attn-writeback-free path.
    out_only = scaled_dot_product_attention(q, k, v, temperature,
                                            return_attn=False)
    jax.block_until_ready(out_only)
    assert jnp.allclose(out_only, ref_out, atol=2e-3, rtol=2e-3), \
        "output mismatch (return_attn=False)"

    print("KERNEL_OK")
</pallas_src>

<mosaic_0001>
module attributes {stable_mosaic.version = 11 : i64} {
  func.func @_sdpa_kernel_single(%arg0: i32, %arg1: i32, %arg2: memref<2x8x32xf32, #tpu.memory_space<vmem>>, %arg3: memref<2x8x32xf32, #tpu.memory_space<vmem>>, %arg4: memref<2x8x32xf32, #tpu.memory_space<vmem>>, %arg5: memref<2x8x32xf32, #tpu.memory_space<vmem>>, %arg6: memref<2x8x8xf32, #tpu.memory_space<vmem>>) attributes {dimension_semantics = [#tpu.dimension_semantics<parallel>, #tpu.dimension_semantics<parallel>], iteration_bounds = array<i64: 1, 1>, scalar_prefetch = 0 : i64, scratch_operands = 0 : i64, tpu.core_type = #tpu.core_type<tc>, window_params = [{transform_indices = @transform_0, window_bounds = array<i64: 2, 8, 32>}, {transform_indices = @transform_1, window_bounds = array<i64: 2, 8, 32>}, {transform_indices = @transform_2, window_bounds = array<i64: 2, 8, 32>}, {transform_indices = @transform_3, window_bounds = array<i64: 2, 8, 32>}, {transform_indices = @transform_4, window_bounds = array<i64: 2, 8, 8>}]} {
    %c0 = arith.constant 0 : index
    %c0_0 = arith.constant 0 : index
    %c0_1 = arith.constant 0 : index
    %0 = vector.load %arg2[%c0, %c0_0, %c0_1] : memref<2x8x32xf32, #tpu.memory_space<vmem>>, vector<2x8x32xf32>
    %c0_2 = arith.constant 0 : index
    %c0_3 = arith.constant 0 : index
    %c0_4 = arith.constant 0 : index
    %1 = vector.load %arg3[%c0_2, %c0_3, %c0_4] : memref<2x8x32xf32, #tpu.memory_space<vmem>>, vector<2x8x32xf32>
    %c0_5 = arith.constant 0 : index
    %c0_6 = arith.constant 0 : index
    %c0_7 = arith.constant 0 : index
    %2 = vector.load %arg4[%c0_5, %c0_6, %c0_7] : memref<2x8x32xf32, #tpu.memory_space<vmem>>, vector<2x8x32xf32>
    %cst = arith.constant 0.176776692 : f32
    %3 = vector.broadcast %cst : f32 to vector<2x8x32xf32>
    %4 = arith.mulf %0, %3 : vector<2x8x32xf32>
    "tpu.trace_start"() <{level = 10 : i32, message = "bqd,bkd->bqk"}> : () -> ()
    %cst_8 = arith.constant dense<0.000000e+00> : vector<2x8x8xf32>
    %5 = tpu.matmul %4, %1, %cst_8 {dimension_numbers = #tpu.dot_dimension_numbers<[2], [2], [1], [1], [0, 0, 0, 1, 1, 1], [0], [0]>} : vector<2x8x32xf32>, vector<2x8x32xf32>, vector<2x8x8xf32> -> vector<2x8x8xf32>
    "tpu.trace_stop"() : () -> ()
    %cst_9 = arith.constant dense<0xFF800000> : vector<2x8xf32>
    %6 = vector.multi_reduction <maximumf>, %5, %cst_9 [2] : vector<2x8x8xf32> to vector<2x8xf32>
    %7 = vector.shape_cast %6 : vector<2x8xf32> to vector<2x8x1xf32>
    %8 = vector.broadcast %7 : vector<2x8x1xf32> to vector<2x8x8xf32>
    %9 = arith.subf %5, %8 : vector<2x8x8xf32>
    %10 = math.exp %9 : vector<2x8x8xf32>
    %cst_10 = arith.constant dense<0.000000e+00> : vector<2x8xf32>
    %11 = vector.multi_reduction <add>, %10, %cst_10 [2] : vector<2x8x8xf32> to vector<2x8xf32>
    %12 = vector.shape_cast %11 : vector<2x8xf32> to vector<2x8x1xf32>
    %13 = vector.broadcast %12 : vector<2x8x1xf32> to vector<2x8x8xf32>
    %14 = arith.divf %10, %13 : vector<2x8x8xf32>
    %c0_11 = arith.constant 0 : index
    %c0_12 = arith.constant 0 : index
    %c0_13 = arith.constant 0 : index
    %15 = vector.load %arg6[%c0_11, %c0_12, %c0_13] : memref<2x8x8xf32, #tpu.memory_space<vmem>>, vector<2x8x8xf32>
    tpu.vector_store %arg6[%c0_11, %c0_12, %c0_13], %14 {strides = array<i32>} : memref<2x8x8xf32, #tpu.memory_space<vmem>>, vector<2x8x8xf32>,
    "tpu.trace_start"() <{level = 10 : i32, message = "bqk,bkd->bqd"}> : () -> ()
    %cst_14 = arith.constant dense<0.000000e+00> : vector<2x8x32xf32>
    %16 = tpu.matmul %14, %2, %cst_14 {dimension_numbers = #tpu.dot_dimension_numbers<[2], [1], [1], [2], [0, 0, 0, 1, 1, 2], [0], [0]>} : vector<2x8x8xf32>, vector<2x8x32xf32>, vector<2x8x32xf32> -> vector<2x8x32xf32>
    "tpu.trace_stop"() : () -> ()
    %c0_15 = arith.constant 0 : index
    %c0_16 = arith.constant 0 : index
    %c0_17 = arith.constant 0 : index
    %17 = vector.load %arg5[%c0_15, %c0_16, %c0_17] : memref<2x8x32xf32, #tpu.memory_space<vmem>>, vector<2x8x32xf32>
    tpu.vector_store %arg5[%c0_15, %c0_16, %c0_17], %16 {strides = array<i32>} : memref<2x8x32xf32, #tpu.memory_space<vmem>>, vector<2x8x32xf32>,
    return
  }
  func.func @transform_0(%arg0: i32, %arg1: i32) -> (i32, i32, i32) {
    %c0_i32 = arith.constant 0 : i32
    %c0_i32_0 = arith.constant 0 : i32
    return %arg0, %arg1, %c0_i32 : i32, i32, i32
  }
  func.func @transform_1(%arg0: i32, %arg1: i32) -> (i32, i32, i32) {
    %c0_i32 = arith.constant 0 : i32
    %c0_i32_0 = arith.constant 0 : i32
    %c0_i32_1 = arith.constant 0 : i32
    return %arg0, %c0_i32, %c0_i32_0 : i32, i32, i32
  }
  func.func @transform_2(%arg0: i32, %arg1: i32) -> (i32, i32, i32) {
    %c0_i32 = arith.constant 0 : i32
    %c0_i32_0 = arith.constant 0 : i32
    %c0_i32_1 = arith.constant 0 : i32
    return %arg0, %c0_i32, %c0_i32_0 : i32, i32, i32
  }
  func.func @transform_3(%arg0: i32, %arg1: i32) -> (i32, i32, i32) {
    %c0_i32 = arith.constant 0 : i32
    %c0_i32_0 = arith.constant 0 : i32
    return %arg0, %arg1, %c0_i32 : i32, i32, i32
  }
  func.func @transform_4(%arg0: i32, %arg1: i32) -> (i32, i32, i32) {
    %c0_i32 = arith.constant 0 : i32
    %c0_i32_0 = arith.constant 0 : i32
    return %arg0, %arg1, %c0_i32 : i32, i32, i32
  }
}

</mosaic_0001>

<llo_original>
// kernel: tpu_custom_call.1
$region0: #{tpu_custom_call.1}
  #allocation0 [shape = 'u32[]', space=smem, size = 0x4, offset = 0x4, fixed_abs, tag = 'smem constant byte address 0x4 - core index']
  #allocation1 [shape = 'u32[144,128]{1,0:T(1,128)}', space=vmem, size = 0x12000, scoped, tag = 'internal scratch']
  %s0 = inlined_call_operand.hbm [shape: f32[2,8,32], index: 0, kind: input, shape index: {}]
  %s1 = inlined_call_operand.hbm [shape: f32[2,8,32], index: 1, kind: input, shape index: {}]
  %s2 = inlined_call_operand.hbm [shape: f32[2,8,32], index: 2, kind: input, shape index: {}]
  %s3 = inlined_call_operand.hbm [shape: f32[2,8,32], index: 3, kind: output, shape index: {0}]
  %s4 = inlined_call_operand.hbm [shape: f32[2,8,8], index: 4, kind: output, shape index: {1}]
  %5 = xla_tuple %s3, %s4
  %s6 = sld [smem:[#allocation0]]
  $region42: #{tpu_custom_call.1} parent=0
    _
  %s8 = ssub.s32 1, %s6
  %s9 = scalar_select 0, %s8, %s6
  $region1: #{tpu_custom_call.1} parent=0
    #allocation2 [shape = 'u8[8192]{0}', space=vmem, size = 0x2000, scoped, tag = 'input window, operand 0, single buffered']
    #allocation3 [shape = 's32[1]{0}', space=sflag, size = 0x4, scoped, tag = 'scoped memory for tpu_custom_call.1']
    #allocation4 [shape = 's32[1]{0}', space=sflag, size = 0x4, scoped, tag = 'scoped memory for tpu_custom_call.1']
    #allocation5 [shape = 'u8[8192]{0}', space=vmem, size = 0x2000, scoped, tag = 'input window, operand 1, single buffered']
    #allocation6 [shape = 's32[1]{0}', space=sflag, size = 0x4, scoped, tag = 'scoped memory for tpu_custom_call.1']
    #allocation7 [shape = 'u8[8192]{0}', space=vmem, size = 0x2000, scoped, tag = 'input window, operand 2, single buffered']
    #allocation8 [shape = 'u8[8192]{0}', space=vmem, size = 0x2000, scoped, tag = 'output window, operand 0, single buffered']
    #allocation9 [shape = 'u8[8192]{0}', space=vmem, size = 0x2000, scoped, tag = 'output window, operand 1, single buffered']
    #allocation10 [shape = 's32[1]{0}', space=sflag, size = 0x4, scoped, tag = 'scoped memory for tpu_custom_call.1']
    %10 = vsyncpa [#allocation3], 0
    %11 = vsyncpa [#allocation6], 0
    %12 = vsyncpa [#allocation4], 0
    %13 = vsyncpa [#allocation10], 0
    // Predicated region
    $region2: #{tpu_custom_call.1} parent=1 // pred_check
      _
    $region3: #{tpu_custom_call.1} parent=1 // pred_check_branch
      %15 = sbr.rel (0) target = $region5
    $region4: #{tpu_custom_call.1} parent=1 // pred_region
      %s17 = ssub.s32 256, 256
      %18 = vsyncadd [#allocation3], %s17
      %s19 = sshll.u32 [#allocation2], 4
      %s20 = int_to_ptr.vmem [resolvable:$true] %s19
      %25 = dma.hbm_to_vmem [thread:$0]  %s0, 256, %s20, [#allocation3], 128, 128, 8
    $region5: #{tpu_custom_call.1} parent=1 // pred_fallthru
      _
    // Predicated region
    $region6: #{tpu_custom_call.1} parent=1 // pred_check
      _
    $region7: #{tpu_custom_call.1} parent=1 // pred_check_branch
      %27 = sbr.rel (0) target = $region9
    $region8: #{tpu_custom_call.1} parent=1 // pred_region
      %s29 = ssub.s32 256, 256
      %30 = vsyncadd [#allocation6], %s29
      %s31 = sshll.u32 [#allocation5], 4
      %s32 = int_to_ptr.vmem [resolvable:$true] %s31
      %37 = dma.hbm_to_vmem [thread:$0]  %s1, 256, %s32, [#allocation6], 128, 128, 8
    $region9: #{tpu_custom_call.1} parent=1 // pred_fallthru
      _
    // Predicated region
    $region10: #{tpu_custom_call.1} parent=1 // pred_check
      _
    $region11: #{tpu_custom_call.1} parent=1 // pred_check_branch
      %39 = sbr.rel (0) target = $region13
    $region12: #{tpu_custom_call.1} parent=1 // pred_region
      %s41 = ssub.s32 256, 256
      %42 = vsyncadd [#allocation6], %s41
      %s43 = sshll.u32 [#allocation7], 4
      %s44 = int_to_ptr.vmem [resolvable:$true] %s43
      %49 = dma.hbm_to_vmem [thread:$0]  %s2, 256, %s44, [#allocation6], 128, 128, 8
    $region13: #{tpu_custom_call.1} parent=1 // pred_fallthru
      _
    // Predicated region
    $region14: #{tpu_custom_call.1} parent=1 // pred_check
      _
    $region15: #{tpu_custom_call.1} parent=1 // pred_check_branch
      %51 = sbr.rel (0) target = $region17
    $region16: #{tpu_custom_call.1} parent=1 // pred_region
      %52 = dma.done [#allocation3], 256
    $region17: #{tpu_custom_call.1} parent=1 // pred_fallthru
      _
    // Predicated region
    $region18: #{tpu_custom_call.1} parent=1 // pred_check
      _
    $region19: #{tpu_custom_call.1} parent=1 // pred_check_branch
      %54 = sbr.rel (0) target = $region21
    $region20: #{tpu_custom_call.1} parent=1 // pred_region
      %55 = dma.done [#allocation6], 256
    $region21: #{tpu_custom_call.1} parent=1 // pred_fallthru
      _
    // Predicated region
    $region22: #{tpu_custom_call.1} parent=1 // pred_check
      _
    $region23: #{tpu_custom_call.1} parent=1 // pred_check_branch
      %57 = sbr.rel (0) target = $region25
    $region24: #{tpu_custom_call.1} parent=1 // pred_region
      %58 = dma.done [#allocation6], 256
    $region25: #{tpu_custom_call.1} parent=1 // pred_fallthru
      _
    %v59 = vld [vmem:[#allocation2] sm:$0xff]
    %v60 = vld [vmem:[#allocation2 + $0x8] sm:$0xff]
    %v61 = vld [vmem:[#allocation5] sm:$0xff]
    %v62 = vld [vmem:[#allocation5 + $0x8] sm:$0xff]
    %v63 = vld [vmem:[#allocation7] sm:$0xff]
    %v64 = vld [vmem:[#allocation7 + $0x8] sm:$0xff]
    %v65 = vmul.f32 %v59, 0.17677669
    %v66 = vmul.f32 %v60, 0.17677669
    %vm67 = vcmask 261120
    %v69 = vsel %vm67, %v65, 0
    %v72 = vsel %vm67, %v61, 0
    %74 = vmatprep.subr.mxu0 0.0
    %75 = vmatpush1.xpose.msra.mxu0 0.0
    %76 = vmatprep.subr.mxu0 0.0
    %77 = vmatpush1.xpose.msra.mxu0 0.0
    %78 = vmatprep.subr.mxu0 0.0
    %79 = vmatpush1.xpose.msra.mxu0 0.0
    %80 = vmatprep.subr.mxu0 0.0
    %81 = vmatpush1.xpose.msra.mxu0 0.0
    %82 = vmatprep.subr.mxu0 0.0
    %83 = vmatpush1.xpose.msra.mxu0 0.0
    %84 = vmatprep.subr.mxu0 0.0
    %85 = vmatpush1.xpose.msra.mxu0 0.0
    %86 = vmatprep.subr.mxu0 0.0
    %87 = vmatpush1.xpose.msra.mxu0 0.0
    %88 = vmatprep.subr.mxu0 0.0
    %89 = vmatpush1.xpose.msra.mxu0 0.0
    %90 = vmatprep.subr.mxu0 0.0
    %91 = vmatpush1.xpose.msra.mxu0 0.0
    %92 = vmatprep.subr.mxu0 0.0
    %93 = vmatpush1.xpose.msra.mxu0 0.0
    %94 = vmatprep.subr.mxu0 0.0
    %95 = vmatpush1.xpose.msra.mxu0 0.0
    %96 = vmatprep.subr.mxu0 0.0
    %97 = vmatpush1.xpose.msra.mxu0 0.0
    %98 = vmatprep.subr.mxu0 0.0
    %99 = vmatpush1.xpose.msra.mxu0 0.0
    %100 = vmatprep.subr.mxu0 0.0
    %101 = vmatpush1.xpose.msra.mxu0 0.0
    %102 = vmatprep.subr.mxu0 0.0
    %103 = vmatpush1.xpose.msra.mxu0 0.0
    %104 = vmatprep.subr.mxu0 0.0
    %105 = vmatpush1.xpose.msra.mxu0 %v72
    %106 = vmatprep.subr.mxu0 0.0
    %107 = vmatpush2.xpose.msra.mxu0 0.0
    %108 = vmatprep.subr.mxu0 0.0
    %109 = vmatpush2.xpose.msra.mxu0 0.0
    %110 = vmatprep.subr.mxu0 0.0
    %111 = vmatpush2.xpose.msra.mxu0 0.0
    %112 = vmatprep.subr.mxu0 0.0
    %113 = vmatpush2.xpose.msra.mxu0 0.0
    %114 = vmatprep.subr.mxu0 0.0
    %115 = vmatpush2.xpose.msra.mxu0 0.0
    %116 = vmatprep.subr.mxu0 0.0
    %117 = vmatpush2.xpose.msra.mxu0 0.0
    %118 = vmatprep.subr.mxu0 0.0
    %119 = vmatpush2.xpose.msra.mxu0 0.0
    %120 = vmatprep.subr.mxu0 0.0
    %121 = vmatpush2.xpose.msra.mxu0 0.0
    %122 = vmatprep.subr.mxu0 0.0
    %123 = vmatpush2.xpose.msra.mxu0 0.0
    %124 = vmatprep.subr.mxu0 0.0
    %125 = vmatpush2.xpose.msra.mxu0 0.0
    %126 = vmatprep.subr.mxu0 0.0
    %127 = vmatpush2.xpose.msra.mxu0 0.0
    %128 = vmatprep.subr.mxu0 0.0
    %129 = vmatpush2.xpose.msra.mxu0 0.0
    %130 = vmatprep.subr.mxu0 0.0
    %131 = vmatpush2.xpose.msra.mxu0 0.0
    %132 = vmatprep.subr.mxu0 0.0
    %133 = vmatpush2.xpose.msra.mxu0 0.0
    %134 = vmatprep.subr.mxu0 0.0
    %135 = vmatpush2.xpose.msra.mxu0 0.0
    %136 = vmatprep.subr.mxu0 0.0
    %137 = vmatpush2.xpose.msra.mxu0 0.0
    %138 = vmatprep.mubr.f32.mxu0 0.0
    %139 = vmatmul.mubr.f32.gmra.mxu0 %v69
    %v140 = vpop.f32.mrf.mxu0
    %v141 = vadd.f32 0.0, %v140
    %v142 = vpop.f32.mrf.mxu0
    %143 = vdwg.mxu0
    %v145 = vsel %vm67, %v66, 0
    %v148 = vsel %vm67, %v62, 0
    %150 = vmatprep.subr.mxu0 0.0
    %151 = vmatpush1.xpose.msra.mxu0 0.0
    %152 = vmatprep.subr.mxu0 0.0
    %153 = vmatpush1.xpose.msra.mxu0 0.0
    %154 = vmatprep.subr.mxu0 0.0
    %155 = vmatpush1.xpose.msra.mxu0 0.0
    %156 = vmatprep.subr.mxu0 0.0
    %157 = vmatpush1.xpose.msra.mxu0 0.0
    %158 = vmatprep.subr.mxu0 0.0
    %159 = vmatpush1.xpose.msra.mxu0 0.0
    %160 = vmatprep.subr.mxu0 0.0
    %161 = vmatpush1.xpose.msra.mxu0 0.0
    %162 = vmatprep.subr.mxu0 0.0
    %163 = vmatpush1.xpose.msra.mxu0 0.0
    %164 = vmatprep.subr.mxu0 0.0
    %165 = vmatpush1.xpose.msra.mxu0 0.0
    %166 = vmatprep.subr.mxu0 0.0
    %167 = vmatpush1.xpose.msra.mxu0 0.0
    %168 = vmatprep.subr.mxu0 0.0
    %169 = vmatpush1.xpose.msra.mxu0 0.0
    %170 = vmatprep.subr.mxu0 0.0
    %171 = vmatpush1.xpose.msra.mxu0 0.0
    %172 = vmatprep.subr.mxu0 0.0
    %173 = vmatpush1.xpose.msra.mxu0 0.0
    %174 = vmatprep.subr.mxu0 0.0
    %175 = vmatpush1.xpose.msra.mxu0 0.0
    %176 = vmatprep.subr.mxu0 0.0
    %177 = vmatpush1.xpose.msra.mxu0 0.0
    %178 = vmatprep.subr.mxu0 0.0
    %179 = vmatpush1.xpose.msra.mxu0 0.0
    %180 = vmatprep.subr.mxu0 0.0
    %181 = vmatpush1.xpose.msra.mxu0 %v148
    %182 = vmatprep.subr.mxu0 0.0
    %183 = vmatpush2.xpose.msra.mxu0 0.0
    %184 = vmatprep.subr.mxu0 0.0
    %185 = vmatpush2.xpose.msra.mxu0 0.0
    %186 = vmatprep.subr.mxu0 0.0
    %187 = vmatpush2.xpose.msra.mxu0 0.0
    %188 = vmatprep.subr.mxu0 0.0
    %189 = vmatpush2.xpose.msra.mxu0 0.0
    %190 = vmatprep.subr.mxu0 0.0
    %191 = vmatpush2.xpose.msra.mxu0 0.0
    %192 = vmatprep.subr.mxu0 0.0
    %193 = vmatpush2.xpose.msra.mxu0 0.0
    %194 = vmatprep.subr.mxu0 0.0
    %195 = vmatpush2.xpose.msra.mxu0 0.0
    %196 = vmatprep.subr.mxu0 0.0
    %197 = vmatpush2.xpose.msra.mxu0 0.0
    %198 = vmatprep.subr.mxu0 0.0
    %199 = vmatpush2.xpose.msra.mxu0 0.0
    %200 = vmatprep.subr.mxu0 0.0
    %201 = vmatpush2.xpose.msra.mxu0 0.0
    %202 = vmatprep.subr.mxu0 0.0
    %203 = vmatpush2.xpose.msra.mxu0 0.0
    %204 = vmatprep.subr.mxu0 0.0
    %205 = vmatpush2.xpose.msra.mxu0 0.0
    %206 = vmatprep.subr.mxu0 0.0
    %207 = vmatpush2.xpose.msra.mxu0 0.0
    %208 = vmatprep.subr.mxu0 0.0
    %209 = vmatpush2.xpose.msra.mxu0 0.0
    %210 = vmatprep.subr.mxu0 0.0
    %211 = vmatpush2.xpose.msra.mxu0 0.0
    %212 = vmatprep.subr.mxu0 0.0
    %213 = vmatpush2.xpose.msra.mxu0 0.0
    %214 = vmatprep.mubr.f32.mxu0 0.0
    %215 = vmatmul.mubr.f32.gmra.mxu0 %v145
    %v216 = vpop.f32.mrf.mxu0
    %v217 = vadd.f32 0.0, %v216
    %v218 = vpop.f32.mrf.mxu0
    %219 = vdwg.mxu0
    %vm220 = vcmask 64512
    %v221 = vsel %vm220, %v141, -inf
    %222 = vmax.xlane.f32.xlu0 %v221
    %v223 = vpop.xlane.xlu0 %222
    %v224 = vsel %vm220, %v217, -inf
    %225 = vmax.xlane.f32.xlu0 %v224
    %v226 = vpop.xlane.xlu0 %225
    %v227 = vsub.f32 %v141, %v223
    %v228 = vsub.f32 %v217, %v226
    %v229 = vmul.f32 %v227, 1.442695
    %v230 = vpow.pop %v229
    %v231 = vmul.f32 %v228, 1.442695
    %v232 = vpow.pop %v231
    %v233 = vsel %vm220, %v230, 0.0
    %234 = vadd.xlane.f32.xlu0 %v233
    %v235 = vpop.xlane.xlu0 %234
    %v236 = vsel %vm220, %v232, 0.0
    %237 = vadd.xlane.f32.xlu0 %v236
    %v238 = vpop.xlane.xlu0 %237
    %v239 = vrcp.pop %v235
    %v240 = vmul.f32 %v230, %v239
    %v241 = vrcp.pop %v238
    %v242 = vmul.f32 %v232, %v241
    %243 = vst.msk [vmem:[#allocation9] sm:$0xff] %vm220, %v240
    %244 = vst.msk [vmem:[#allocation9 + $0x8] sm:$0xff] %vm220, %v242
    %v246 = vsel %vm220, %v240, 0
    %248 = vmatprep.subr.mxu0 0.0
    %249 = vmatpush1.msra.mxu0 0.0
    %250 = vmatprep.subr.mxu0 0.0
    %251 = vmatpush1.msra.mxu0 0.0
    %252 = vmatprep.subr.mxu0 0.0
    %253 = vmatpush1.msra.mxu0 0.0
    %254 = vmatprep.subr.mxu0 0.0
    %255 = vmatpush1.msra.mxu0 0.0
    %256 = vmatprep.subr.mxu0 0.0
    %257 = vmatpush1.msra.mxu0 0.0
    %258 = vmatprep.subr.mxu0 0.0
    %259 = vmatpush1.msra.mxu0 0.0
    %260 = vmatprep.subr.mxu0 0.0
    %261 = vmatpush1.msra.mxu0 0.0
    %262 = vmatprep.subr.mxu0 0.0
    %263 = vmatpush1.msra.mxu0 0.0
    %264 = vmatprep.subr.mxu0 0.0
    %265 = vmatpush1.msra.mxu0 0.0
    %266 = vmatprep.subr.mxu0 0.0
    %267 = vmatpush1.msra.mxu0 0.0
    %268 = vmatprep.subr.mxu0 0.0
    %269 = vmatpush1.msra.mxu0 0.0
    %270 = vmatprep.subr.mxu0 0.0
    %271 = vmatpush1.msra.mxu0 0.0
    %272 = vmatprep.subr.mxu0 0.0
    %273 = vmatpush1.msra.mxu0 0.0
    %274 = vmatprep.subr.mxu0 0.0
    %275 = vmatpush1.msra.mxu0 0.0
    %276 = vmatprep.subr.mxu0 0.0
    %277 = vmatpush1.msra.mxu0 0.0
    %278 = vmatprep.subr.mxu0 0.0
    %279 = vmatpush1.msra.mxu0 %v63
    %280 = vmatprep.subr.mxu0 0.0
    %281 = vmatpush2.msra.mxu0 0.0
    %282 = vmatprep.subr.mxu0 0.0
    %283 = vmatpush2.msra.mxu0 0.0
    %284 = vmatprep.subr.mxu0 0.0
    %285 = vmatpush2.msra.mxu0 0.0
    %286 = vmatprep.subr.mxu0 0.0
    %287 = vmatpush2.msra.mxu0 0.0
    %288 = vmatprep.subr.mxu0 0.0
    %289 = vmatpush2.msra.mxu0 0.0
    %290 = vmatprep.subr.mxu0 0.0
    %291 = vmatpush2.msra.mxu0 0.0
    %292 = vmatprep.subr.mxu0 0.0
    %293 = vmatpush2.msra.mxu0 0.0
    %294 = vmatprep.subr.mxu0 0.0
    %295 = vmatpush2.msra.mxu0 0.0
    %296 = vmatprep.subr.mxu0 0.0
    %297 = vmatpush2.msra.mxu0 0.0
    %298 = vmatprep.subr.mxu0 0.0
    %299 = vmatpush2.msra.mxu0 0.0
    %300 = vmatprep.subr.mxu0 0.0
    %301 = vmatpush2.msra.mxu0 0.0
    %302 = vmatprep.subr.mxu0 0.0
    %303 = vmatpush2.msra.mxu0 0.0
    %304 = vmatprep.subr.mxu0 0.0
    %305 = vmatpush2.msra.mxu0 0.0
    %306 = vmatprep.subr.mxu0 0.0
    %307 = vmatpush2.msra.mxu0 0.0
    %308 = vmatprep.subr.mxu0 0.0
    %309 = vmatpush2.msra.mxu0 0.0
    %310 = vmatprep.subr.mxu0 0.0
    %311 = vmatpush2.msra.mxu0 0.0
    %312 = vmatprep.mubr.f32.mxu0 0.0
    %313 = vmatmul.mubr.f32.gmra.mxu0 %v246
    %v314 = vpop.f32.mrf.mxu0
    %v315 = vadd.f32 0.0, %v314
    %v316 = vpop.f32.mrf.mxu0
    %317 = vdwg.mxu0
    %v319 = vsel %vm220, %v242, 0
    %321 = vmatprep.subr.mxu0 0.0
    %322 = vmatpush1.msra.mxu0 0.0
    %323 = vmatprep.subr.mxu0 0.0
    %324 = vmatpush1.msra.mxu0 0.0
    %325 = vmatprep.subr.mxu0 0.0
    %326 = vmatpush1.msra.mxu0 0.0
    %327 = vmatprep.subr.mxu0 0.0
    %328 = vmatpush1.msra.mxu0 0.0
    %329 = vmatprep.subr.mxu0 0.0
    %330 = vmatpush1.msra.mxu0 0.0
    %331 = vmatprep.subr.mxu0 0.0
    %332 = vmatpush1.msra.mxu0 0.0
    %333 = vmatprep.subr.mxu0 0.0
    %334 = vmatpush1.msra.mxu0 0.0
    %335 = vmatprep.subr.mxu0 0.0
    %336 = vmatpush1.msra.mxu0 0.0
    %337 = vmatprep.subr.mxu0 0.0
    %338 = vmatpush1.msra.mxu0 0.0
    %339 = vmatprep.subr.mxu0 0.0
    %340 = vmatpush1.msra.mxu0 0.0
    %341 = vmatprep.subr.mxu0 0.0
    %342 = vmatpush1.msra.mxu0 0.0
    %343 = vmatprep.subr.mxu0 0.0
    %344 = vmatpush1.msra.mxu0 0.0
    %345 = vmatprep.subr.mxu0 0.0
    %346 = vmatpush1.msra.mxu0 0.0
    %347 = vmatprep.subr.mxu0 0.0
    %348 = vmatpush1.msra.mxu0 0.0
    %349 = vmatprep.subr.mxu0 0.0
    %350 = vmatpush1.msra.mxu0 0.0
    %351 = vmatprep.subr.mxu0 0.0
    %352 = vmatpush1.msra.mxu0 %v64
    %353 = vmatprep.subr.mxu0 0.0
    %354 = vmatpush2.msra.mxu0 0.0
    %355 = vmatprep.subr.mxu0 0.0
    %356 = vmatpush2.msra.mxu0 0.0
    %357 = vmatprep.subr.mxu0 0.0
    %358 = vmatpush2.msra.mxu0 0.0
    %359 = vmatprep.subr.mxu0 0.0
    %360 = vmatpush2.msra.mxu0 0.0
    %361 = vmatprep.subr.mxu0 0.0
    %362 = vmatpush2.msra.mxu0 0.0
    %363 = vmatprep.subr.mxu0 0.0
    %364 = vmatpush2.msra.mxu0 0.0
    %365 = vmatprep.subr.mxu0 0.0
    %366 = vmatpush2.msra.mxu0 0.0
    %367 = vmatprep.subr.mxu0 0.0
    %368 = vmatpush2.msra.mxu0 0.0
    %369 = vmatprep.subr.mxu0 0.0
    %370 = vmatpush2.msra.mxu0 0.0
    %371 = vmatprep.subr.mxu0 0.0
    %372 = vmatpush2.msra.mxu0 0.0
    %373 = vmatprep.subr.mxu0 0.0
    %374 = vmatpush2.msra.mxu0 0.0
    %375 = vmatprep.subr.mxu0 0.0
    %376 = vmatpush2.msra.mxu0 0.0
    %377 = vmatprep.subr.mxu0 0.0
    %378 = vmatpush2.msra.mxu0 0.0
    %379 = vmatprep.subr.mxu0 0.0
    %380 = vmatpush2.msra.mxu0 0.0
    %381 = vmatprep.subr.mxu0 0.0
    %382 = vmatpush2.msra.mxu0 0.0
    %383 = vmatprep.subr.mxu0 0.0
    %384 = vmatpush2.msra.mxu0 0.0
    %385 = vmatprep.mubr.f32.mxu0 0.0
    %386 = vmatmul.mubr.f32.gmra.mxu0 %v319
    %v387 = vpop.f32.mrf.mxu0
    %v388 = vadd.f32 0.0, %v387
    %v389 = vpop.f32.mrf.mxu0
    %390 = vdwg.mxu0
    %391 = vst.msk [vmem:[#allocation8] sm:$0xff] %vm67, %v315
    %392 = vst.msk [vmem:[#allocation8 + $0x8] sm:$0xff] %vm67, %v388
    // Predicated region
    $region26: #{tpu_custom_call.1} parent=1 // pred_check
      _
    $region27: #{tpu_custom_call.1} parent=1 // pred_check_branch
      %394 = sbr.rel (0) target = $region29
    $region28: #{tpu_custom_call.1} parent=1 // pred_region
      %s396 = ssub.s32 256, 256
      %397 = vsyncadd [#allocation4], %s396
      %s398 = sshll.u32 [#allocation8], 4
      %s399 = int_to_ptr.vmem [resolvable:$true] %s398
      %404 = dma.vmem_to_hbm [thread:$0]  %s399, 256, %s3, [#allocation4], 128, 128, 8
    $region29: #{tpu_custom_call.1} parent=1 // pred_fallthru
      _
    // Predicated region
    $region30: #{tpu_custom_call.1} parent=1 // pred_check
      _
    $region31: #{tpu_custom_call.1} parent=1 // pred_check_branch
      %406 = sbr.rel (0) target = $region33
    $region32: #{tpu_custom_call.1} parent=1 // pred_region
      %s408 = ssub.s32 256, 256
      %409 = vsyncadd [#allocation10], %s408
      %s410 = sshll.u32 [#allocation9], 4
      %s411 = int_to_ptr.vmem [resolvable:$true] %s410
      %416 = dma.vmem_to_hbm [thread:$0]  %s411, 256, %s4, [#allocation10], 128, 128, 8
    $region33: #{tpu_custom_call.1} parent=1 // pred_fallthru
      _
    // Predicated region
    $region34: #{tpu_custom_call.1} parent=1 // pred_check
      _
    $region35: #{tpu_custom_call.1} parent=1 // pred_check_branch
      %418 = sbr.rel (0) target = $region37
    $region36: #{tpu_custom_call.1} parent=1 // pred_region
      %419 = dma.done [#allocation4], 256
    $region37: #{tpu_custom_call.1} parent=1 // pred_fallthru
      _
    // Predicated region
    $region38: #{tpu_custom_call.1} parent=1 // pred_check
      _
    $region39: #{tpu_custom_call.1} parent=1 // pred_check_branch
      %421 = sbr.rel (0) target = $region41
    $region40: #{tpu_custom_call.1} parent=1 // pred_region
      %422 = dma.done [#allocation10], 256
    $region41: #{tpu_custom_call.1} parent=1 // pred_fallthru
      _
    %423 = vsyncpa [#allocation3], 1
    %424 = vsyncpa [#allocation6], 1
    %425 = vsyncpa [#allocation4], 1
    %426 = vsyncpa [#allocation10], 1

</llo_original>
